<compile_context>
chip_gen: v6e
topology: v6e:2x2x1
jax: 0.10.0
libtpu: 0.0.40
codegen_flags: <defaults>
</compile_context>

<pallas_src>
import jax
import jax.numpy as jnp
from jax.experimental import pallas as pl
from jax.experimental.pallas import tpu as pltpu

LAYER_SIZE = 128


def _soft_q_kernel(xa_ref, w1_ref, b1_ref, w2_ref, b2_ref, w3_ref, b3_ref,
                   out_ref):
    # Layer 1: Linear(S+A -> 128) + ReLU. bf16 operands, f32 accumulation.
    h1 = (jnp.dot(xa_ref[...], w1_ref[...], preferred_element_type=jnp.float32)
          + b1_ref[...])
    h1 = jnp.maximum(h1, 0.0).astype(jnp.bfloat16)

    # Layer 2: Linear(128 -> 128) + ReLU.
    h2 = (jnp.dot(h1, w2_ref[...], preferred_element_type=jnp.float32)
          + b2_ref[...])
    h2 = jnp.maximum(h2, 0.0).astype(jnp.bfloat16)

    # Layer 3 (critic head 128 -> 1), lane-dense: contract w3 (1,128) with
    # h2 (TB,128) over both last dims -> (1, TB) row slab (A @ B^T on the MXU,
    # no explicit transpose of h2). b3 arrives as an SMEM scalar.
    q = jax.lax.dot_general(
        w3_ref[...], h2,
        dimension_numbers=(((1,), (1,)), ((), ())),
        preferred_element_type=jnp.float32)
    out_ref[...] = (q + b3_ref[0, 0]).astype(out_ref.dtype)


def _round_up(n, m):
    return ((n + m - 1) // m) * m


def soft_q_forward(x, a, params, *, block_b=1024):
    """x: [B, S], a: [B, A] -> q: [B, 1]."""
    w1, b1, w2, b2, w3, b3 = params
    B, S = x.shape
    A = a.shape[-1]
    K = S + A

    # Fused concat + bf16 MXU operands (accumulation stays f32 in-kernel).
    xa = jnp.concatenate([x, a], axis=1).astype(jnp.bfloat16)
    w1 = w1.astype(jnp.bfloat16)
    w2 = w2.astype(jnp.bfloat16)
    w3 = w3.astype(jnp.bfloat16)
    b1 = b1.astype(jnp.float32)
    b2 = b2.astype(jnp.float32)
    b3 = b3.astype(jnp.float32)

    # Batch tile: multiple of 128 (lane-dense (1, TB) output slab, bf16
    # sublane packing). Pad B up to a whole number of tiles.
    b128 = _round_up(B, 128)
    tb = min(block_b, b128)
    if b128 >= 2 * 128:
        # Keep >= 2 grid steps so the "parallel" batch axis can split across
        # v7x's two TensorCores (no effect on single-TC v5e/v6e).
        tb = min(tb, ((b128 // 128 + 1) // 2) * 128)
    b_pad = _round_up(B, tb)
    if b_pad != B:
        xa = jnp.pad(xa, ((0, b_pad - B), (0, 0)))
    num_tiles = b_pad // tb

    def resident(arr):  # same block every grid step -> stays VMEM-resident
        nd = arr.ndim
        return pl.BlockSpec(arr.shape, lambda i, _nd=nd: (0,) * _nd)

    # Explicit VMEM budget (v5e scoped default is only 16 MiB): double-buffered
    # xa tiles + (1, tb) outputs + resident weights + h1/h2 headroom, 2x margin.
    vmem_bytes = (2 * tb * K * 2                      # xa tiles (bf16) x2 bufs
                  + 2 * tb * 4                        # (1, tb) f32 out x2 bufs
                  + 2 * (K * LAYER_SIZE * 2           # w1 (bf16)
                         + LAYER_SIZE * LAYER_SIZE * 2  # w2 (bf16)
                         + LAYER_SIZE * 2             # w3 row (bf16)
                         + 2 * LAYER_SIZE * 4)        # b1, b2 (f32)
                  + 4 * tb * LAYER_SIZE * 4)          # h1/h2 intermediates
    vmem_limit = int(min(max(2 * vmem_bytes, 4 << 20), 64 << 20))

    flops = 2 * b_pad * (K * LAYER_SIZE + LAYER_SIZE * LAYER_SIZE + LAYER_SIZE)
    bytes_accessed = (2 * b_pad * K + 4 * b_pad
                      + 2 * (K + LAYER_SIZE + 1) * LAYER_SIZE
                      + 4 * (2 * LAYER_SIZE + 1))

    q_slab = pl.pallas_call(
        _soft_q_kernel,
        out_shape=jax.ShapeDtypeStruct((1, b_pad), jnp.float32),
        grid_spec=pltpu.PrefetchScalarGridSpec(
            num_scalar_prefetch=0,
            grid=(num_tiles,),
            in_specs=[
                pl.BlockSpec((tb, K), lambda i: (i, 0)),   # batch-tiled input
                resident(w1), resident(b1),
                resident(w2), resident(b2),
                resident(w3),
                pl.BlockSpec(memory_space=pltpu.MemorySpace.SMEM),  # b3 scalar
            ],
            out_specs=pl.BlockSpec((1, tb), lambda i: (0, i)),
        ),
        compiler_params=pltpu.CompilerParams(
            dimension_semantics=("parallel",),
            vmem_limit_bytes=vmem_limit),
        cost_estimate=pl.CostEstimate(
            flops=flops, transcendentals=0, bytes_accessed=bytes_accessed),
    )(xa, w1, b1, w2, b2, w3, b3)

    return q_slab[0, :B, None]   # back to [B, 1]


def init_params(key, state_dim, action_dim):
    """Mirror torch.nn.Linear's U(-1/sqrt(fan_in), 1/sqrt(fan_in)) init.
    Weights stored [in, out]; w3 stored as a (1, 128) row; b3 as (1, 1)."""
    dims = [(state_dim + action_dim, LAYER_SIZE),
            (LAYER_SIZE, LAYER_SIZE),
            (LAYER_SIZE, 1)]
    ws, bs = [], []
    for fan_in, fan_out in dims:
        key, kw, kb = jax.random.split(key, 3)
        bound = 1.0 / jnp.sqrt(jnp.float32(fan_in))
        ws.append(jax.random.uniform(kw, (fan_in, fan_out), jnp.float32,
                                     minval=-bound, maxval=bound))
        bs.append(jax.random.uniform(kb, (1, fan_out), jnp.float32,
                                     minval=-bound, maxval=bound))
    w1, w2, w3 = ws
    b1, b2, b3 = bs
    return (w1, b1, w2, b2, w3.T, b3)   # w3 as a (1, 128) row; b3 (1, 1)


if __name__ == "__main__":
    state_dim, action_dim, batch = 12, 4, 8

    key = jax.random.PRNGKey(0)
    kp, kx, ka = jax.random.split(key, 3)

    params = init_params(kp, state_dim, action_dim)
    x = jax.random.normal(kx, (batch, state_dim), jnp.float32)
    a = jax.random.normal(ka, (batch, action_dim), jnp.float32)

    q = soft_q_forward(x, a, params)
    jax.block_until_ready(q)

    # Reference: the original (concat-based) SoftQNetwork forward in f32 JAX.
    w1, b1, w2, b2, w3, b3 = params
    xa = jnp.concatenate([x, a], axis=1)
    h1 = jnp.maximum(xa @ w1 + b1, 0.0)
    h2 = jnp.maximum(h1 @ w2 + b2, 0.0)
    q_ref = h2 @ w3.T + b3

    assert q.shape == (batch, 1)
    # bf16 MXU operands (f32 accumulation) -> loose tolerance vs f32 reference.
    assert jnp.allclose(q, q_ref, atol=5e-2, rtol=5e-2), (
        float(jnp.max(jnp.abs(q - q_ref))))

    print("KERNEL_OK")
</pallas_src>

<mosaic_0001>
module attributes {stable_mosaic.version = 11 : i64} {
  func.func @_soft_q_kernel(%arg0: i32, %arg1: memref<128x16xbf16, #tpu.memory_space<vmem>>, %arg2: memref<16x128xbf16, #tpu.memory_space<vmem>>, %arg3: memref<1x128xf32, #tpu.memory_space<vmem>>, %arg4: memref<128x128xbf16, #tpu.memory_space<vmem>>, %arg5: memref<1x128xf32, #tpu.memory_space<vmem>>, %arg6: memref<1x128xbf16, #tpu.memory_space<vmem>>, %arg7: memref<1x1xf32, #tpu.memory_space<smem>>, %arg8: memref<1x128xf32, #tpu.memory_space<vmem>>) attributes {dimension_semantics = [#tpu.dimension_semantics<parallel>], iteration_bounds = array<i64: 1>, scalar_prefetch = 0 : i64, scratch_operands = 0 : i64, tpu.core_type = #tpu.core_type<tc>, window_params = [{transform_indices = @transform_0, window_bounds = array<i64: 128, 16>}, {pipeline_mode = #tpu.pipeline_mode<synchronous>, transform_indices = @transform_1, window_bounds = array<i64: 16, 128>}, {pipeline_mode = #tpu.pipeline_mode<synchronous>, transform_indices = @transform_2, window_bounds = array<i64: 1, 128>}, {pipeline_mode = #tpu.pipeline_mode<synchronous>, transform_indices = @transform_3, window_bounds = array<i64: 128, 128>}, {pipeline_mode = #tpu.pipeline_mode<synchronous>, transform_indices = @transform_4, window_bounds = array<i64: 1, 128>}, {pipeline_mode = #tpu.pipeline_mode<synchronous>, transform_indices = @transform_5, window_bounds = array<i64: 1, 128>}, {transform_indices = @transform_6, window_bounds = array<i64: 1, 1>}, {transform_indices = @transform_7, window_bounds = array<i64: 1, 128>}]} {
    %c0 = arith.constant 0 : index
    %c0_0 = arith.constant 0 : index
    %0 = vector.load %arg1[%c0, %c0_0] : memref<128x16xbf16, #tpu.memory_space<vmem>>, vector<128x16xbf16>
    %c0_1 = arith.constant 0 : index
    %c0_2 = arith.constant 0 : index
    %1 = vector.load %arg2[%c0_1, %c0_2] : memref<16x128xbf16, #tpu.memory_space<vmem>>, vector<16x128xbf16>
    %cst = arith.constant dense<0.000000e+00> : vector<128x128xf32>
    %2 = tpu.matmul %0, %1, %cst {dimension_numbers = #tpu.dot_dimension_numbers<[1], [0], [0], [1], [0, 0, 1, 1], [], []>} : vector<128x16xbf16>, vector<16x128xbf16>, vector<128x128xf32> -> vector<128x128xf32>
    %c0_3 = arith.constant 0 : index
    %c0_4 = arith.constant 0 : index
    %3 = vector.load %arg3[%c0_3, %c0_4] : memref<1x128xf32, #tpu.memory_space<vmem>>, vector<1x128xf32>
    %4 = vector.broadcast %3 : vector<1x128xf32> to vector<128x128xf32>
    %5 = arith.addf %2, %4 : vector<128x128xf32>
    %cst_5 = arith.constant 0.000000e+00 : f32
    %6 = vector.broadcast %cst_5 : f32 to vector<128x128xf32>
    %7 = arith.maximumf %5, %6 : vector<128x128xf32>
    %8 = arith.truncf %7 : vector<128x128xf32> to vector<128x128xbf16>
    %c0_6 = arith.constant 0 : index
    %c0_7 = arith.constant 0 : index
    %9 = vector.load %arg4[%c0_6, %c0_7] : memref<128x128xbf16, #tpu.memory_space<vmem>>, vector<128x128xbf16>
    %cst_8 = arith.constant dense<0.000000e+00> : vector<128x128xf32>
    %10 = tpu.matmul %8, %9, %cst_8 {dimension_numbers = #tpu.dot_dimension_numbers<[1], [0], [0], [1], [0, 0, 1, 1], [], []>} : vector<128x128xbf16>, vector<128x128xbf16>, vector<128x128xf32> -> vector<128x128xf32>
    %c0_9 = arith.constant 0 : index
    %c0_10 = arith.constant 0 : index
    %11 = vector.load %arg5[%c0_9, %c0_10] : memref<1x128xf32, #tpu.memory_space<vmem>>, vector<1x128xf32>
    %12 = vector.broadcast %11 : vector<1x128xf32> to vector<128x128xf32>
    %13 = arith.addf %10, %12 : vector<128x128xf32>
    %cst_11 = arith.constant 0.000000e+00 : f32
    %14 = vector.broadcast %cst_11 : f32 to vector<128x128xf32>
    %15 = arith.maximumf %13, %14 : vector<128x128xf32>
    %16 = arith.truncf %15 : vector<128x128xf32> to vector<128x128xbf16>
    %c0_12 = arith.constant 0 : index
    %c0_13 = arith.constant 0 : index
    %17 = vector.load %arg6[%c0_12, %c0_13] : memref<1x128xbf16, #tpu.memory_space<vmem>>, vector<1x128xbf16>
    %cst_14 = arith.constant dense<0.000000e+00> : vector<1x128xf32>
    %18 = tpu.matmul %17, %16, %cst_14 {dimension_numbers = #tpu.dot_dimension_numbers<[1], [1], [0], [0], [0, 0, 1, 0], [], []>} : vector<1x128xbf16>, vector<128x128xbf16>, vector<1x128xf32> -> vector<1x128xf32>
    %c0_15 = arith.constant 0 : index
    %c0_16 = arith.constant 0 : index
    %19 = memref.load %arg7[%c0_15, %c0_16] : memref<1x1xf32, #tpu.memory_space<smem>>
    %20 = vector.broadcast %19 : f32 to vector<1x128xf32>
    %21 = arith.addf %18, %20 : vector<1x128xf32>
    %c0_17 = arith.constant 0 : index
    %c0_18 = arith.constant 0 : index
    %22 = vector.load %arg8[%c0_17, %c0_18] : memref<1x128xf32, #tpu.memory_space<vmem>>, vector<1x128xf32>
    tpu.vector_store %arg8[%c0_17, %c0_18], %21 {strides = array<i32>} : memref<1x128xf32, #tpu.memory_space<vmem>>, vector<1x128xf32>,
    return
  }
  func.func @transform_0(%arg0: i32) -> (i32, i32) {
    %c0_i32 = arith.constant 0 : i32
    %c0_i32_0 = arith.constant 0 : i32
    return %arg0, %c0_i32 : i32, i32
  }
  func.func @transform_1(%arg0: i32) -> (i32, i32) {
    %c0_i32 = arith.constant 0 : i32
    %c0_i32_0 = arith.constant 0 : i32
    %c0_i32_1 = arith.constant 0 : i32
    return %c0_i32, %c0_i32_0 : i32, i32
  }
  func.func @transform_2(%arg0: i32) -> (i32, i32) {
    %c0_i32 = arith.constant 0 : i32
    %c0_i32_0 = arith.constant 0 : i32
    %c0_i32_1 = arith.constant 0 : i32
    return %c0_i32, %c0_i32_0 : i32, i32
  }
  func.func @transform_3(%arg0: i32) -> (i32, i32) {
    %c0_i32 = arith.constant 0 : i32
    %c0_i32_0 = arith.constant 0 : i32
    %c0_i32_1 = arith.constant 0 : i32
    return %c0_i32, %c0_i32_0 : i32, i32
  }
  func.func @transform_4(%arg0: i32) -> (i32, i32) {
    %c0_i32 = arith.constant 0 : i32
    %c0_i32_0 = arith.constant 0 : i32
    %c0_i32_1 = arith.constant 0 : i32
    return %c0_i32, %c0_i32_0 : i32, i32
  }
  func.func @transform_5(%arg0: i32) -> (i32, i32) {
    %c0_i32 = arith.constant 0 : i32
    %c0_i32_0 = arith.constant 0 : i32
    %c0_i32_1 = arith.constant 0 : i32
    return %c0_i32, %c0_i32_0 : i32, i32
  }
  func.func @transform_6(%arg0: i32) -> (i32, i32) {
    %c0_i32 = arith.constant 0 : i32
    %c0_i32_0 = arith.constant 0 : i32
    %c0_i32_1 = arith.constant 0 : i32
    return %c0_i32, %c0_i32_0 : i32, i32
  }
  func.func @transform_7(%arg0: i32) -> (i32, i32) {
    %c0_i32 = arith.constant 0 : i32
    %c0_i32_0 = arith.constant 0 : i32
    return %c0_i32, %arg0 : i32, i32
  }
}

</mosaic_0001>

<llo_original>
// kernel: tpu_custom_call.1
$region0: #{tpu_custom_call.1}
  #allocation0 [shape = 'u32[]', space=smem, size = 0x4, offset = 0x4, fixed_abs, tag = 'smem constant byte address 0x4 - core index']
  #allocation1 [shape = 'u32[144,128]{1,0:T(1,128)}', space=vmem, size = 0x12000, scoped, tag = 'internal scratch']
  #allocation2 [shape = 'f32[1,1]{1,0:T(1,128)S(6)}', space=smem, size = 0x200, scoped, tag = 'scoped memory for tpu_custom_call.1']
  %s0 = inlined_call_operand.vmem [shape: bf16[128,16], index: 0, kind: input, shape index: {}]
  %s1 = inlined_call_operand.vmem [shape: bf16[16,128], index: 1, kind: input, shape index: {}]
  %s2 = inlined_call_operand.vmem [shape: f32[1,128], index: 2, kind: input, shape index: {}]
  %s3 = inlined_call_operand.vmem [shape: bf16[128,128], index: 3, kind: input, shape index: {}]
  %s4 = inlined_call_operand.vmem [shape: f32[1,128], index: 4, kind: input, shape index: {}]
  %s5 = inlined_call_operand.vmem [shape: bf16[1,128], index: 5, kind: input, shape index: {}]
  %s6 = inlined_call_operand.<no memory space> [shape: f32[1,1], index: 6, kind: input, shape index: {}]
  %s7 = inlined_call_operand.hbm [shape: f32[1,128], index: 7, kind: output, shape index: {}]
  %s8 = sld [smem:[#allocation0]]
  $region38: #{tpu_custom_call.1} parent=0
    _
  %s10 = ssub.s32 1, %s8
  %s11 = scalar_select 0, %s10, %s8
  %12 = sst [smem:[#allocation2]] %s6
  $region1: #{tpu_custom_call.1} parent=0
    #allocation3 [shape = 'u8[512]{0}', space=vmem, size = 0x400, scoped, tag = 'output window, operand 0, single buffered']
    #allocation4 [shape = 's32[1]{0}', space=sflag, size = 0x4, scoped, tag = 'scoped memory for tpu_custom_call.1']
    %13 = vsyncpa [#allocation4], 0
    // Predicated region
    $region2: #{tpu_custom_call.1} parent=1 // pred_check
      _
    $region3: #{tpu_custom_call.1} parent=1 // pred_check_branch
      %15 = sbr.rel (0) target = $region5
    $region4: #{tpu_custom_call.1} parent=1 // pred_region
      _
    $region5: #{tpu_custom_call.1} parent=1 // pred_fallthru
      _
    // Predicated region
    $region6: #{tpu_custom_call.1} parent=1 // pred_check
      _
    $region7: #{tpu_custom_call.1} parent=1 // pred_check_branch
      %17 = sbr.rel (0) target = $region9
    $region8: #{tpu_custom_call.1} parent=1 // pred_region
      _
    $region9: #{tpu_custom_call.1} parent=1 // pred_fallthru
      _
    // Predicated region
    $region10: #{tpu_custom_call.1} parent=1 // pred_check
      _
    $region11: #{tpu_custom_call.1} parent=1 // pred_check_branch
      %19 = sbr.rel (0) target = $region13
    $region12: #{tpu_custom_call.1} parent=1 // pred_region
      _
    $region13: #{tpu_custom_call.1} parent=1 // pred_fallthru
      _
    // Predicated region
    $region14: #{tpu_custom_call.1} parent=1 // pred_check
      _
    $region15: #{tpu_custom_call.1} parent=1 // pred_check_branch
      %21 = sbr.rel (0) target = $region17
    $region16: #{tpu_custom_call.1} parent=1 // pred_region
      _
    $region17: #{tpu_custom_call.1} parent=1 // pred_fallthru
      _
    // Predicated region
    $region18: #{tpu_custom_call.1} parent=1 // pred_check
      _
    $region19: #{tpu_custom_call.1} parent=1 // pred_check_branch
      %23 = sbr.rel (0) target = $region21
    $region20: #{tpu_custom_call.1} parent=1 // pred_region
      _
    $region21: #{tpu_custom_call.1} parent=1 // pred_fallthru
      _
    // Predicated region
    $region22: #{tpu_custom_call.1} parent=1 // pred_check
      _
    $region23: #{tpu_custom_call.1} parent=1 // pred_check_branch
      %25 = sbr.rel (0) target = $region25
    $region24: #{tpu_custom_call.1} parent=1 // pred_region
      _
    $region25: #{tpu_custom_call.1} parent=1 // pred_fallthru
      _
    // Predicated region
    $region26: #{tpu_custom_call.1} parent=1 // pred_check
      _
    $region27: #{tpu_custom_call.1} parent=1 // pred_check_branch
      %27 = sbr.rel (0) target = $region29
    $region28: #{tpu_custom_call.1} parent=1 // pred_region
      _
    $region29: #{tpu_custom_call.1} parent=1 // pred_fallthru
      _
    %v29 = vld [vmem:[%s0] sm:$0xf]
    %v30 = vld [vmem:[%s0 + $0x4] sm:$0xf]
    %v31 = vld [vmem:[%s0 + $0x8] sm:$0xf]
    %v32 = vld [vmem:[%s0 + $0xc] sm:$0xf]
    %v33 = vld [vmem:[%s0 + $0x10] sm:$0xf]
    %v34 = vld [vmem:[%s0 + $0x14] sm:$0xf]
    %v35 = vld [vmem:[%s0 + $0x18] sm:$0xf]
    %v36 = vld [vmem:[%s0 + $0x1c] sm:$0xf]
    %v37 = vld [vmem:[%s0 + $0x20] sm:$0xf]
    %v38 = vld [vmem:[%s0 + $0x24] sm:$0xf]
    %v39 = vld [vmem:[%s0 + $0x28] sm:$0xf]
    %v40 = vld [vmem:[%s0 + $0x2c] sm:$0xf]
    %v41 = vld [vmem:[%s0 + $0x30] sm:$0xf]
    %v42 = vld [vmem:[%s0 + $0x34] sm:$0xf]
    %v43 = vld [vmem:[%s0 + $0x38] sm:$0xf]
    %v44 = vld [vmem:[%s0 + $0x3c] sm:$0xf]
    %v45 = vld [vmem:[%s1] sm:$0xf]
    %v46 = vld [vmem:[%s1 + $0x4] sm:$0xf]
    %v47 = vld [vmem:[%s2] sm:$0x1]
    %v49 = vlaneseq
    %v50 = vshrl.u32 %v49, 7
    %v51 = vsub.s32 0, %v50
    %v52 = vrot.slane %v47, %v51
    %v70 = vunpack.c.l.b16 %v29
    %v71 = vunpack.c.l.b16 %v30
    %v72 = vunpack.c.l.b16 %v31
    %v73 = vunpack.c.l.b16 %v32
    %v74 = vunpack.c.l.b16 %v33
    %v75 = vunpack.c.l.b16 %v34
    %v76 = vunpack.c.l.b16 %v35
    %v77 = vunpack.c.l.b16 %v36
    %v78 = vunpack.c.l.b16 %v37
    %v79 = vunpack.c.l.b16 %v38
    %v80 = vunpack.c.l.b16 %v39
    %v81 = vunpack.c.l.b16 %v40
    %v82 = vunpack.c.l.b16 %v41
    %v83 = vunpack.c.l.b16 %v42
    %v84 = vunpack.c.l.b16 %v43
    %v85 = vunpack.c.l.b16 %v44
    %v86 = vpack.c.b16 %v71, %v70
    %v87 = vpack.c.b16 %v73, %v72
    %v88 = vpack.c.b16 %v75, %v74
    %v89 = vpack.c.b16 %v77, %v76
    %v90 = vpack.c.b16 %v79, %v78
    %v91 = vpack.c.b16 %v81, %v80
    %v92 = vpack.c.b16 %v83, %v82
    %v93 = vpack.c.b16 %v85, %v84
    %v96 = vunpack.c.l.b16 %v45
    %v97 = vunpack.c.l.b16 %v46
    %v98 = vpack.c.b16 %v97, %v96
    %vm100 = vcmask 130048
    %v102 = vsel %vm100, %v86, 0
    %v105 = vsel %vm100, %v87, 0
    %v108 = vsel %vm100, %v88, 0
    %v111 = vsel %vm100, %v89, 0
    %v114 = vsel %vm100, %v90, 0
    %v117 = vsel %vm100, %v91, 0
    %v120 = vsel %vm100, %v92, 0
    %v123 = vsel %vm100, %v93, 0
    %125 = vmatprep.subr.bf16.mxu0 0
    %126 = vmatpush1.bf16.msra.mxu0 0
    %127 = vmatprep.subr.bf16.mxu0 0
    %128 = vmatpush1.bf16.msra.mxu0 0
    %129 = vmatprep.subr.bf16.mxu0 0
    %130 = vmatpush1.bf16.msra.mxu0 0
    %131 = vmatprep.subr.bf16.mxu0 0
    %132 = vmatpush1.bf16.msra.mxu0 0
    %133 = vmatprep.subr.bf16.mxu0 0
    %134 = vmatpush1.bf16.msra.mxu0 0
    %135 = vmatprep.subr.bf16.mxu0 0
    %136 = vmatpush1.bf16.msra.mxu0 0
    %137 = vmatprep.subr.bf16.mxu0 0
    %138 = vmatpush1.bf16.msra.mxu0 0
    %139 = vmatprep.subr.bf16.mxu0 0
    %140 = vmatpush1.bf16.msra.mxu0 %v98
    %141 = vmatprep.subr.bf16.mxu0 0
    %142 = vmatpush2.bf16.msra.mxu0 0
    %143 = vmatprep.subr.bf16.mxu0 0
    %144 = vmatpush2.bf16.msra.mxu0 0
    %145 = vmatprep.subr.bf16.mxu0 0
    %146 = vmatpush2.bf16.msra.mxu0 0
    %147 = vmatprep.subr.bf16.mxu0 0
    %148 = vmatpush2.bf16.msra.mxu0 0
    %149 = vmatprep.subr.bf16.mxu0 0
    %150 = vmatpush2.bf16.msra.mxu0 0
    %151 = vmatprep.subr.bf16.mxu0 0
    %152 = vmatpush2.bf16.msra.mxu0 0
    %153 = vmatprep.subr.bf16.mxu0 0
    %154 = vmatpush2.bf16.msra.mxu0 0
    %155 = vmatprep.subr.bf16.mxu0 0
    %156 = vmatpush2.bf16.msra.mxu0 0
    %157 = vmatprep.mubr.bf16.mxu0 0
    %158 = vmatmul.mubr.bf16.gmra.mxu0 %v102
    %v159 = vpop.f32.mrf.mxu0
    %v160 = vadd.f32 %v52, %v159
    %v161 = vpop.f32.mrf.mxu0
    %v162 = vpop.f32.mrf.mxu0
    %v163 = vadd.f32 %v52, %v162
    %v164 = vpop.f32.mrf.mxu0
    %165 = vmatprep.mubr.bf16.mxu0 0
    %166 = vmatmul.mubr.bf16.gmra.mxu0 %v105
    %v167 = vpop.f32.mrf.mxu0
    %v168 = vadd.f32 %v52, %v167
    %v169 = vpop.f32.mrf.mxu0
    %v170 = vpop.f32.mrf.mxu0
    %v171 = vadd.f32 %v52, %v170
    %v172 = vpop.f32.mrf.mxu0
    %173 = vmatprep.mubr.bf16.mxu0 0
    %174 = vmatmul.mubr.bf16.gmra.mxu0 %v108
    %v175 = vpop.f32.mrf.mxu0
    %v176 = vadd.f32 %v52, %v175
    %v177 = vpop.f32.mrf.mxu0
    %v178 = vpop.f32.mrf.mxu0
    %v179 = vadd.f32 %v52, %v178
    %v180 = vpop.f32.mrf.mxu0
    %181 = vmatprep.mubr.bf16.mxu0 0
    %182 = vmatmul.mubr.bf16.gmra.mxu0 %v111
    %v183 = vpop.f32.mrf.mxu0
    %v184 = vadd.f32 %v52, %v183
    %v185 = vpop.f32.mrf.mxu0
    %v186 = vpop.f32.mrf.mxu0
    %v187 = vadd.f32 %v52, %v186
    %v188 = vpop.f32.mrf.mxu0
    %189 = vmatprep.mubr.bf16.mxu0 0
    %190 = vmatmul.mubr.bf16.gmra.mxu0 %v114
    %v191 = vpop.f32.mrf.mxu0
    %v192 = vadd.f32 %v52, %v191
    %v193 = vpop.f32.mrf.mxu0
    %v194 = vpop.f32.mrf.mxu0
    %v195 = vadd.f32 %v52, %v194
    %v196 = vpop.f32.mrf.mxu0
    %197 = vmatprep.mubr.bf16.mxu0 0
    %198 = vmatmul.mubr.bf16.gmra.mxu0 %v117
    %v199 = vpop.f32.mrf.mxu0
    %v200 = vadd.f32 %v52, %v199
    %v201 = vpop.f32.mrf.mxu0
    %v202 = vpop.f32.mrf.mxu0
    %v203 = vadd.f32 %v52, %v202
    %v204 = vpop.f32.mrf.mxu0
    %205 = vmatprep.mubr.bf16.mxu0 0
    %206 = vmatmul.mubr.bf16.gmra.mxu0 %v120
    %v207 = vpop.f32.mrf.mxu0
    %v208 = vadd.f32 %v52, %v207
    %v209 = vpop.f32.mrf.mxu0
    %v210 = vpop.f32.mrf.mxu0
    %v211 = vadd.f32 %v52, %v210
    %v212 = vpop.f32.mrf.mxu0
    %213 = vmatprep.mubr.bf16.mxu0 0
    %214 = vmatmul.mubr.bf16.gmra.mxu0 %v123
    %v215 = vpop.f32.mrf.mxu0
    %v216 = vadd.f32 %v52, %v215
    %v217 = vpop.f32.mrf.mxu0
    %v218 = vpop.f32.mrf.mxu0
    %v219 = vadd.f32 %v52, %v218
    %v220 = vpop.f32.mrf.mxu0
    %221 = vdwg.mxu0
    %v222 = vmax.f32 %v160, 0.0
    %v223 = vmax.f32 %v163, 0.0
    %v224 = vmax.f32 %v168, 0.0
    %v225 = vmax.f32 %v171, 0.0
    %v226 = vmax.f32 %v176, 0.0
    %v227 = vmax.f32 %v179, 0.0
    %v228 = vmax.f32 %v184, 0.0
    %v229 = vmax.f32 %v187, 0.0
    %v230 = vmax.f32 %v192, 0.0
    %v231 = vmax.f32 %v195, 0.0
    %v232 = vmax.f32 %v200, 0.0
    %v233 = vmax.f32 %v203, 0.0
    %v234 = vmax.f32 %v208, 0.0
    %v235 = vmax.f32 %v211, 0.0
    %v236 = vmax.f32 %v216, 0.0
    %v237 = vmax.f32 %v219, 0.0
    %v238 = vpack.c.bf16 %v223, %v222
    %v239 = vpack.c.bf16 %v225, %v224
    %v240 = vpack.c.bf16 %v227, %v226
    %v241 = vpack.c.bf16 %v229, %v228
    %v242 = vpack.c.bf16 %v231, %v230
    %v243 = vpack.c.bf16 %v233, %v232
    %v244 = vpack.c.bf16 %v235, %v234
    %v245 = vpack.c.bf16 %v237, %v236
    %v246 = vld [vmem:[%s3] sm:$0xf]
    %v247 = vld [vmem:[%s3 + $0x4] sm:$0xf]
    %v248 = vld [vmem:[%s3 + $0x8] sm:$0xf]
    %v249 = vld [vmem:[%s3 + $0xc] sm:$0xf]
    %v250 = vld [vmem:[%s3 + $0x10] sm:$0xf]
    %v251 = vld [vmem:[%s3 + $0x14] sm:$0xf]
    %v252 = vld [vmem:[%s3 + $0x18] sm:$0xf]
    %v253 = vld [vmem:[%s3 + $0x1c] sm:$0xf]
    %v254 = vld [vmem:[%s3 + $0x20] sm:$0xf]
    %v255 = vld [vmem:[%s3 + $0x24] sm:$0xf]
    %v256 = vld [vmem:[%s3 + $0x28] sm:$0xf]
    %v257 = vld [vmem:[%s3 + $0x2c] sm:$0xf]
    %v258 = vld [vmem:[%s3 + $0x30] sm:$0xf]
    %v259 = vld [vmem:[%s3 + $0x34] sm:$0xf]
    %v260 = vld [vmem:[%s3 + $0x38] sm:$0xf]
    %v261 = vld [vmem:[%s3 + $0x3c] sm:$0xf]
    %v262 = vld [vmem:[%s4] sm:$0x1]
    %v264 = vlaneseq
    %v265 = vshrl.u32 %v264, 7
    %v266 = vsub.s32 0, %v265
    %v267 = vrot.slane %v262, %v266
    %v285 = vunpack.c.l.b16 %v246
    %v286 = vunpack.c.l.b16 %v247
    %v287 = vunpack.c.l.b16 %v248
    %v288 = vunpack.c.l.b16 %v249
    %v289 = vunpack.c.l.b16 %v250
    %v290 = vunpack.c.l.b16 %v251
    %v291 = vunpack.c.l.b16 %v252
    %v292 = vunpack.c.l.b16 %v253
    %v293 = vunpack.c.l.b16 %v254
    %v294 = vunpack.c.l.b16 %v255
    %v295 = vunpack.c.l.b16 %v256
    %v296 = vunpack.c.l.b16 %v257
    %v297 = vunpack.c.l.b16 %v258
    %v298 = vunpack.c.l.b16 %v259
    %v299 = vunpack.c.l.b16 %v260
    %v300 = vunpack.c.l.b16 %v261
    %v301 = vpack.c.b16 %v286, %v285
    %v302 = vpack.c.b16 %v288, %v287
    %v303 = vpack.c.b16 %v290, %v289
    %v304 = vpack.c.b16 %v292, %v291
    %v305 = vpack.c.b16 %v294, %v293
    %v306 = vpack.c.b16 %v296, %v295
    %v307 = vpack.c.b16 %v298, %v297
    %v308 = vpack.c.b16 %v300, %v299
    %317 = vmatprep.subr.bf16.mxu0 0
    %318 = vmatpush1.bf16.msra.mxu0 %v308
    %319 = vmatprep.subr.bf16.mxu0 0
    %320 = vmatpush1.bf16.msra.mxu0 %v307
    %321 = vmatprep.subr.bf16.mxu0 0
    %322 = vmatpush1.bf16.msra.mxu0 %v306
    %323 = vmatprep.subr.bf16.mxu0 0
    %324 = vmatpush1.bf16.msra.mxu0 %v305
    %325 = vmatprep.subr.bf16.mxu0 0
    %326 = vmatpush1.bf16.msra.mxu0 %v304
    %327 = vmatprep.subr.bf16.mxu0 0
    %328 = vmatpush1.bf16.msra.mxu0 %v303
    %329 = vmatprep.subr.bf16.mxu0 0
    %330 = vmatpush1.bf16.msra.mxu0 %v302
    %331 = vmatprep.subr.bf16.mxu0 0
    %332 = vmatpush1.bf16.msra.mxu0 %v301
    %333 = vmatprep.subr.bf16.mxu0 0
    %334 = vmatpush2.bf16.msra.mxu0 0
    %335 = vmatprep.subr.bf16.mxu0 0
    %336 = vmatpush2.bf16.msra.mxu0 0
    %337 = vmatprep.subr.bf16.mxu0 0
    %338 = vmatpush2.bf16.msra.mxu0 0
    %339 = vmatprep.subr.bf16.mxu0 0
    %340 = vmatpush2.bf16.msra.mxu0 0
    %341 = vmatprep.subr.bf16.mxu0 0
    %342 = vmatpush2.bf16.msra.mxu0 0
    %343 = vmatprep.subr.bf16.mxu0 0
    %344 = vmatpush2.bf16.msra.mxu0 0
    %345 = vmatprep.subr.bf16.mxu0 0
    %346 = vmatpush2.bf16.msra.mxu0 0
    %347 = vmatprep.subr.bf16.mxu0 0
    %348 = vmatpush2.bf16.msra.mxu0 0
    %349 = vmatprep.mubr.bf16.mxu0 0
    %350 = vmatmul.mubr.bf16.gmra.mxu0 %v238
    %v351 = vpop.f32.mrf.mxu0
    %v352 = vadd.f32 %v267, %v351
    %v353 = vpop.f32.mrf.mxu0
    %v354 = vpop.f32.mrf.mxu0
    %v355 = vadd.f32 %v267, %v354
    %v356 = vpop.f32.mrf.mxu0
    %357 = vmatprep.mubr.bf16.mxu0 0
    %358 = vmatmul.mubr.bf16.gmra.mxu0 %v239
    %v359 = vpop.f32.mrf.mxu0
    %v360 = vadd.f32 %v267, %v359
    %v361 = vpop.f32.mrf.mxu0
    %v362 = vpop.f32.mrf.mxu0
    %v363 = vadd.f32 %v267, %v362
    %v364 = vpop.f32.mrf.mxu0
    %365 = vmatprep.mubr.bf16.mxu0 0
    %366 = vmatmul.mubr.bf16.gmra.mxu0 %v240
    %v367 = vpop.f32.mrf.mxu0
    %v368 = vadd.f32 %v267, %v367
    %v369 = vpop.f32.mrf.mxu0
    %v370 = vpop.f32.mrf.mxu0
    %v371 = vadd.f32 %v267, %v370
    %v372 = vpop.f32.mrf.mxu0
    %373 = vmatprep.mubr.bf16.mxu0 0
    %374 = vmatmul.mubr.bf16.gmra.mxu0 %v241
    %v375 = vpop.f32.mrf.mxu0
    %v376 = vadd.f32 %v267, %v375
    %v377 = vpop.f32.mrf.mxu0
    %v378 = vpop.f32.mrf.mxu0
    %v379 = vadd.f32 %v267, %v378
    %v380 = vpop.f32.mrf.mxu0
    %381 = vmatprep.mubr.bf16.mxu0 0
    %382 = vmatmul.mubr.bf16.gmra.mxu0 %v242
    %v383 = vpop.f32.mrf.mxu0
    %v384 = vadd.f32 %v267, %v383
    %v385 = vpop.f32.mrf.mxu0
    %v386 = vpop.f32.mrf.mxu0
    %v387 = vadd.f32 %v267, %v386
    %v388 = vpop.f32.mrf.mxu0
    %389 = vmatprep.mubr.bf16.mxu0 0
    %390 = vmatmul.mubr.bf16.gmra.mxu0 %v243
    %v391 = vpop.f32.mrf.mxu0
    %v392 = vadd.f32 %v267, %v391
    %v393 = vpop.f32.mrf.mxu0
    %v394 = vpop.f32.mrf.mxu0
    %v395 = vadd.f32 %v267, %v394
    %v396 = vpop.f32.mrf.mxu0
    %397 = vmatprep.mubr.bf16.mxu0 0
    %398 = vmatmul.mubr.bf16.gmra.mxu0 %v244
    %v399 = vpop.f32.mrf.mxu0
    %v400 = vadd.f32 %v267, %v399
    %v401 = vpop.f32.mrf.mxu0
    %v402 = vpop.f32.mrf.mxu0
    %v403 = vadd.f32 %v267, %v402
    %v404 = vpop.f32.mrf.mxu0
    %405 = vmatprep.mubr.bf16.mxu0 0
    %406 = vmatmul.mubr.bf16.gmra.mxu0 %v245
    %v407 = vpop.f32.mrf.mxu0
    %v408 = vadd.f32 %v267, %v407
    %v409 = vpop.f32.mrf.mxu0
    %v410 = vpop.f32.mrf.mxu0
    %v411 = vadd.f32 %v267, %v410
    %v412 = vpop.f32.mrf.mxu0
    %413 = vdwg.mxu0
    %v414 = vmax.f32 %v352, 0.0
    %v415 = vmax.f32 %v355, 0.0
    %v416 = vmax.f32 %v360, 0.0
    %v417 = vmax.f32 %v363, 0.0
    %v418 = vmax.f32 %v368, 0.0
    %v419 = vmax.f32 %v371, 0.0
    %v420 = vmax.f32 %v376, 0.0
    %v421 = vmax.f32 %v379, 0.0
    %v422 = vmax.f32 %v384, 0.0
    %v423 = vmax.f32 %v387, 0.0
    %v424 = vmax.f32 %v392, 0.0
    %v425 = vmax.f32 %v395, 0.0
    %v426 = vmax.f32 %v400, 0.0
    %v427 = vmax.f32 %v403, 0.0
    %v428 = vmax.f32 %v408, 0.0
    %v429 = vmax.f32 %v411, 0.0
    %v430 = vpack.c.bf16 %v415, %v414
    %v431 = vpack.c.bf16 %v417, %v416
    %v432 = vpack.c.bf16 %v419, %v418
    %v433 = vpack.c.bf16 %v421, %v420
    %v434 = vpack.c.bf16 %v423, %v422
    %v435 = vpack.c.bf16 %v425, %v424
    %v436 = vpack.c.bf16 %v427, %v426
    %v437 = vpack.c.bf16 %v429, %v428
    %v438 = vld [vmem:[%s5] sm:$0x1]
    %s439 = sld [smem:[#allocation2]]
    %v440 = vstv %s439
    %441 = vmatprep.subr.bf16.mxu0 0
    %442 = vmatpush1.bf16.xpose.msra.mxu0 %v437
    %443 = vmatprep.subr.bf16.mxu0 0
    %444 = vmatpush1.bf16.xpose.msra.mxu0 %v436
    %445 = vmatprep.subr.bf16.mxu0 0
    %446 = vmatpush1.bf16.xpose.msra.mxu0 %v435
    %447 = vmatprep.subr.bf16.mxu0 0
    %448 = vmatpush1.bf16.xpose.msra.mxu0 %v434
    %449 = vmatprep.subr.bf16.mxu0 0
    %450 = vmatpush1.bf16.xpose.msra.mxu0 %v433
    %451 = vmatprep.subr.bf16.mxu0 0
    %452 = vmatpush1.bf16.xpose.msra.mxu0 %v432
    %453 = vmatprep.subr.bf16.mxu0 0
    %454 = vmatpush1.bf16.xpose.msra.mxu0 %v431
    %455 = vmatprep.subr.bf16.mxu0 0
    %456 = vmatpush1.bf16.xpose.msra.mxu0 %v430
    %457 = vmatprep.subr.bf16.mxu0 0
    %458 = vmatpush2.bf16.xpose.msra.mxu0 0
    %459 = vmatprep.subr.bf16.mxu0 0
    %460 = vmatpush2.bf16.xpose.msra.mxu0 0
    %461 = vmatprep.subr.bf16.mxu0 0
    %462 = vmatpush2.bf16.xpose.msra.mxu0 0
    %463 = vmatprep.subr.bf16.mxu0 0
    %464 = vmatpush2.bf16.xpose.msra.mxu0 0
    %465 = vmatprep.subr.bf16.mxu0 0
    %466 = vmatpush2.bf16.xpose.msra.mxu0 0
    %467 = vmatprep.subr.bf16.mxu0 0
    %468 = vmatpush2.bf16.xpose.msra.mxu0 0
    %469 = vmatprep.subr.bf16.mxu0 0
    %470 = vmatpush2.bf16.xpose.msra.mxu0 0
    %471 = vmatprep.subr.bf16.mxu0 0
    %472 = vmatpush2.bf16.xpose.msra.mxu0 0
    %473 = vmatprep.mubr.bf16.mxu0 0
    %474 = vmatmul.mubr.bf16.gmra.mxu0 %v438
    %v475 = vpop.f32.mrf.mxu0
    %v476 = vadd.f32 %v440, %v475
    %v477 = vpop.f32.mrf.mxu0
    %v478 = vpop.f32.mrf.mxu0
    %v479 = vpop.f32.mrf.mxu0
    %480 = vdwg.mxu0
    %481 = vst [vmem:[#allocation3] sm:$0x1] %v476
    // Predicated region
    $region30: #{tpu_custom_call.1} parent=1 // pred_check
      _
    $region31: #{tpu_custom_call.1} parent=1 // pred_check_branch
      %483 = sbr.rel (0) target = $region33
    $region32: #{tpu_custom_call.1} parent=1 // pred_region
      %s485 = ssub.s32 16, 16
      %486 = vsyncadd [#allocation4], %s485
      %s488 = sshll.u32 [#allocation3], 4
      %s489 = int_to_ptr.vmem [resolvable:$true] %s488
      %491 = dma.vmem_to_hbm [thread:$0]  %s489, 16, %s7, [#allocation4]
    $region33: #{tpu_custom_call.1} parent=1 // pred_fallthru
      _
    // Predicated region
    $region34: #{tpu_custom_call.1} parent=1 // pred_check
      _
    $region35: #{tpu_custom_call.1} parent=1 // pred_check_branch
      %493 = sbr.rel (0) target = $region37
    $region36: #{tpu_custom_call.1} parent=1 // pred_region
      %494 = dma.done [#allocation4], 16
    $region37: #{tpu_custom_call.1} parent=1 // pred_fallthru
      _
    %495 = vsyncpa [#allocation4], 1

</llo_original>
